<compile_context>
chip_gen: v7x
topology: tpu7x:2x2x1
jax: 0.10.0
libtpu: 0.0.40
codegen_flags: <defaults>
</compile_context>

<pallas_src>
import functools

import jax
import jax.numpy as jnp
from jax.experimental import pallas as pl
from jax.experimental.pallas import tpu as pltpu


def _round_up(v, m):
    return (v + m - 1) // m * m


# ----------------------------- Pallas kernel --------------------------------
def _conv_gap_kernel(rows_ref, cw_ref, pooled_ref, *, inv_hw):
    """One grid step = (imgs_per_tile) images x (hw_chunk) spatial rows.

    rows_ref   : (imgs_per_tile, hw_chunk, K_pad) bf16  im2col rows, bias-ones
                                                        column, zero K padding
    cw_ref     : (K_pad, F_pad)                   bf16  conv weight + bias row,
                                                        zero padded, resident
    pooled_ref : (imgs_per_tile, F_pad)           f32   per-image GAP features,
                                                        accumulated over chunks
    """
    c = pl.program_id(1)

    @pl.when(c == 0)
    def _():
        pooled_ref[...] = jnp.zeros_like(pooled_ref)

    bt, hwc, kp = rows_ref.shape
    f_pad = pooled_ref.shape[-1]

    # 3x3 conv chunk as one matmul: bf16 MXU inputs, f32 accumulate.
    rows = rows_ref[...].reshape(bt * hwc, kp)
    feat = jnp.dot(rows, cw_ref[...],
                   preferred_element_type=jnp.float32)        # (bt*hwc, F_pad) f32
    feat = jnp.maximum(feat, 0.0)                             # ReLU (f32, VPU)

    # adaptive_avg_pool2d((1,1)) == per-image sum over HW rows * (1/HW);
    # accumulate this chunk's contribution into the resident output block.
    pooled_ref[...] += jnp.sum(feat.reshape(bt, hwc, f_pad), axis=1) * inv_hw


# ------------------------------ JAX wrapper ----------------------------------
def _im2col_3x3(x):
    """x: [N, C, H, W] -> patches [N, H*W, C*9], padding=1, stride=1."""
    N, C, H, W = x.shape
    xp = jnp.pad(x, ((0, 0), (0, 0), (1, 1), (1, 1)))
    cols = []
    for dy in range(3):
        for dx in range(3):
            cols.append(xp[:, :, dy:dy + H, dx:dx + W])        # [N, C, H, W]
    patches = jnp.stack(cols, axis=2)                          # [N, C, 9, H, W]
    return patches.transpose(0, 3, 4, 1, 2).reshape(N, H * W, C * 9)


def _prepare_mxu_operands(x, conv_w, conv_b, k_pad, f_pad):
    """bf16 im2col rows (+ bias column, K zero-pad) and weight (+ bias row)."""
    N, C, H, W = x.shape
    F = conv_w.shape[0]
    HW, CK = H * W, C * 9

    # im2col directly in bf16 (pure data movement, no arithmetic) -> no f32 temp.
    patches = _im2col_3x3(x.astype(jnp.bfloat16))              # (N, HW, CK)
    rows = jnp.concatenate(
        [patches,
         jnp.ones((N, HW, 1), jnp.bfloat16),                   # bias column
         jnp.zeros((N, HW, k_pad - CK - 1), jnp.bfloat16)],    # K zero-pad to 128
        axis=-1)                                               # (N, HW, k_pad)

    cw = jnp.concatenate([conv_w.reshape(F, CK).astype(jnp.float32),
                          conv_b.reshape(F, 1).astype(jnp.float32)], axis=1)
    cw = jnp.pad(cw, ((0, f_pad - F), (0, k_pad - CK - 1)))    # (f_pad, k_pad)
    return rows, cw.T.astype(jnp.bfloat16)                     # (k_pad, f_pad)


def _choose_tiling(N, HW, k_pad, f_pad, budget_bytes=16 * 1024 * 1024):
    """Pick (imgs_per_tile, hw_chunk).

    Per-step cost per fused matmul row = double-buffered bf16 rows + the f32
    post-ReLU intermediate; the budget is sized for the smallest VMEM (v7x,
    64 MiB) so the same tiling is safe on v5e/v6e/v7x. Prefer one maximal tile
    (grid == (1, 1)) over artificially manufacturing grid steps: on v5e/v6e the
    grid is a sequential loop, and when the problem is big enough to split,
    multiple steps arise naturally (which also feeds both v7x TensorCores).
    """
    per_row_bytes = 2 * k_pad * 2 + f_pad * 4
    max_rows = max(8, budget_bytes // per_row_bytes)

    # Whole batch in one maximal step.
    if N * HW <= max_rows:
        return N, HW

    # Split the batch into sublane-aligned (multiple-of-8) groups of whole
    # images when possible -> unmasked pooled-output stores.
    if HW <= max_rows:
        cand = (max_rows // HW) // 8 * 8
        while cand >= 8 and N % cand:
            cand -= 8
        if cand >= 8:
            return cand, HW

    # Otherwise keep the whole batch per step and chunk the HW axis
    # ("arbitrary" reduction axis with accumulation in the output block).
    hw_chunk = 8
    c = 8
    while c <= HW:
        if HW % c == 0 and N * c <= max_rows:
            hw_chunk = c
        c += 8
    return N, hw_chunk


def patch_camelyon_forward(x, conv_w, conv_b, fc_w, fc_b):
    """
    x       : [N, C, H, W]  float32 (NCHW, like PyTorch)
    conv_w  : [F, C, 3, 3]
    conv_b  : [F]
    fc_w    : [1, F]        (PyTorch Linear weight layout [out, in])
    fc_b    : [1]
    returns : logits [N]
    """
    N, C, H, W = x.shape
    F = conv_w.shape[0]
    HW = H * W
    k_pad = _round_up(C * 9 + 1, 128)                          # lane-dense K
    f_pad = _round_up(F, 128)                                  # lane-dense output

    imgs_per_tile, hw_chunk = _choose_tiling(N, HW, k_pad, f_pad)
    assert N % imgs_per_tile == 0 and HW % hw_chunk == 0
    grid = (N // imgs_per_tile, HW // hw_chunk)

    rows, cw = _prepare_mxu_operands(x, conv_w, conv_b, k_pad, f_pad)

    pooled = pl.pallas_call(
        functools.partial(_conv_gap_kernel, inv_hw=1.0 / HW),
        out_shape=jax.ShapeDtypeStruct((N, f_pad), jnp.float32),
        grid_spec=pltpu.PrefetchScalarGridSpec(
            num_scalar_prefetch=0,
            grid=grid,
            in_specs=[
                # (imgs, hw-chunk, K) rows tile; images x spatial fused in M.
                pl.BlockSpec((imgs_per_tile, hw_chunk, k_pad),
                             lambda i, c: (i, c, 0)),
                # conv weight (+ bias row), resident across the whole grid.
                pl.BlockSpec((k_pad, f_pad), lambda i, c: (0, 0)),
            ],
            # Output block constant along the hw-chunk axis -> resident
            # accumulator; lane-dense (f_pad) and sublane-aligned
            # (imgs_per_tile == N or a multiple of 8).
            out_specs=pl.BlockSpec((imgs_per_tile, f_pad), lambda i, c: (i, 0)),
        ),
        compiler_params=pltpu.CompilerParams(
            dimension_semantics=("parallel", "arbitrary"),
            vmem_limit_bytes=48 * 1024 * 1024,     # > 32MiB default, < v7x 64MiB
        ),
    )(rows, cw)                                    # (N, f_pad) pooled features, f32

    # dropout: identity at inference time.
    # output_layer: Linear(feat_size, 1) + final .squeeze(); the 1-wide matvec is
    # hoisted to XLA so the Pallas output stays lane-dense.
    logits = pooled[:, :F] @ fc_w.T.astype(jnp.float32) + fc_b.astype(jnp.float32)
    return logits.reshape(N)


# ------------------------- reference (plain JAX) ------------------------------
def _reference_forward(x, conv_w, conv_b, fc_w, fc_b):
    N, C, H, W = x.shape
    F = conv_w.shape[0]
    HW = H * W
    k_pad = _round_up(C * 9 + 1, 128)
    f_pad = _round_up(F, 128)
    # Same bf16 quantization of the MXU operands as the kernel, f32 accumulate.
    rows, cw = _prepare_mxu_operands(x, conv_w, conv_b, k_pad, f_pad)
    feat = jnp.einsum('nhk,kf->nhf', rows.astype(jnp.float32),
                      cw.astype(jnp.float32))
    feat = jnp.maximum(feat, 0.0)                              # (N, HW, f_pad)
    pooled = feat.sum(axis=1) * (1.0 / HW)                     # (N, f_pad)
    logits = pooled[:, :F] @ fc_w.T + fc_b                     # (N, 1)
    return logits.reshape(N)


# --------------------------------- main ---------------------------------------
if __name__ == "__main__":
    # Small shapes consistent with the module's forward: N x C x H x W images,
    # synthetic feature width F, n_class = 1.
    N, C, H, W = 2, 4, 16, 16
    F = 32          # feat_size of the synthetic backbone (resnet50 would be 2048)
    n_class = 1

    key = jax.random.PRNGKey(0)
    kx, kcw, kcb, kfw, kfb = jax.random.split(key, 5)

    x = jax.random.normal(kx, (N, C, H, W), dtype=jnp.float32)
    conv_w = jax.random.normal(kcw, (F, C, 3, 3), dtype=jnp.float32) * 0.1
    conv_b = jax.random.normal(kcb, (F,), dtype=jnp.float32) * 0.1
    fc_w = jax.random.normal(kfw, (n_class, F), dtype=jnp.float32) * 0.1
    fc_b = jax.random.normal(kfb, (n_class,), dtype=jnp.float32) * 0.1

    logits = patch_camelyon_forward(x, conv_w, conv_b, fc_w, fc_b)
    jax.block_until_ready(logits)

    ref = _reference_forward(x, conv_w, conv_b, fc_w, fc_b)
    assert logits.shape == (N,), logits.shape
    assert jnp.allclose(logits, ref, atol=1e-3, rtol=1e-3), (logits, ref)

    print("KERNEL_OK")
</pallas_src>

<mosaic_0001>
module attributes {stable_mosaic.version = 11 : i64} {
  func.func @_conv_gap_kernel(%arg0: i32, %arg1: i32, %arg2: memref<2x256x128xbf16, #tpu.memory_space<vmem>>, %arg3: memref<128x128xbf16, #tpu.memory_space<vmem>>, %arg4: memref<2x128xf32, #tpu.memory_space<vmem>>) attributes {dimension_semantics = [#tpu.dimension_semantics<parallel>, #tpu.dimension_semantics<arbitrary>], iteration_bounds = array<i64: 1, 1>, scalar_prefetch = 0 : i64, scratch_operands = 0 : i64, tpu.core_type = #tpu.core_type<tc>, window_params = [{transform_indices = @transform_0, window_bounds = array<i64: 2, 256, 128>}, {pipeline_mode = #tpu.pipeline_mode<synchronous>, transform_indices = @transform_1, window_bounds = array<i64: 128, 128>}, {transform_indices = @transform_2, window_bounds = array<i64: 2, 128>}]} {
    %c0_i32 = arith.constant 0 : i32
    %0 = arith.cmpi eq, %arg1, %c0_i32 : i32
    %1 = arith.extui %0 : i1 to i32
    %c0_i32_0 = arith.constant 0 : i32
    %2 = arith.cmpi ne, %1, %c0_i32_0 : i32
    scf.if %2 {
      %cst_12 = arith.constant 0.000000e+00 : f32
      %16 = vector.broadcast %cst_12 : f32 to vector<2x128xf32>
      %c0_13 = arith.constant 0 : index
      %c0_14 = arith.constant 0 : index
      %17 = vector.load %arg4[%c0_13, %c0_14] : memref<2x128xf32, #tpu.memory_space<vmem>>, vector<2x128xf32>
      tpu.vector_store %arg4[%c0_13, %c0_14], %16 {strides = array<i32>} : memref<2x128xf32, #tpu.memory_space<vmem>>, vector<2x128xf32>,
    } else {
    }
    %c0 = arith.constant 0 : index
    %c0_1 = arith.constant 0 : index
    %c0_2 = arith.constant 0 : index
    %3 = vector.load %arg2[%c0, %c0_1, %c0_2] : memref<2x256x128xbf16, #tpu.memory_space<vmem>>, vector<2x256x128xbf16>
    %4 = vector.shape_cast %3 : vector<2x256x128xbf16> to vector<512x128xbf16>
    %c0_3 = arith.constant 0 : index
    %c0_4 = arith.constant 0 : index
    %5 = vector.load %arg3[%c0_3, %c0_4] : memref<128x128xbf16, #tpu.memory_space<vmem>>, vector<128x128xbf16>
    %cst = arith.constant dense<0.000000e+00> : vector<512x128xf32>
    %6 = tpu.matmul %4, %5, %cst {dimension_numbers = #tpu.dot_dimension_numbers<[1], [0], [0], [1], [0, 0, 1, 1], [], []>} : vector<512x128xbf16>, vector<128x128xbf16>, vector<512x128xf32> -> vector<512x128xf32>
    %cst_5 = arith.constant 0.000000e+00 : f32
    %7 = vector.broadcast %cst_5 : f32 to vector<512x128xf32>
    %8 = arith.maximumf %6, %7 : vector<512x128xf32>
    %c0_6 = arith.constant 0 : index
    %c0_7 = arith.constant 0 : index
    %9 = vector.load %arg4[%c0_6, %c0_7] : memref<2x128xf32, #tpu.memory_space<vmem>>, vector<2x128xf32>
    %10 = vector.shape_cast %8 : vector<512x128xf32> to vector<2x256x128xf32>
    %cst_8 = arith.constant dense<0.000000e+00> : vector<2x128xf32>
    %11 = vector.multi_reduction <add>, %10, %cst_8 [1] : vector<2x256x128xf32> to vector<2x128xf32>
    %cst_9 = arith.constant 3.906250e-03 : f32
    %12 = vector.broadcast %cst_9 : f32 to vector<2x128xf32>
    %13 = arith.mulf %11, %12 : vector<2x128xf32>
    %14 = arith.addf %9, %13 : vector<2x128xf32>
    %c0_10 = arith.constant 0 : index
    %c0_11 = arith.constant 0 : index
    %15 = vector.load %arg4[%c0_10, %c0_11] : memref<2x128xf32, #tpu.memory_space<vmem>>, vector<2x128xf32>
    tpu.vector_store %arg4[%c0_10, %c0_11], %14 {strides = array<i32>} : memref<2x128xf32, #tpu.memory_space<vmem>>, vector<2x128xf32>,
    return
  }
  func.func @transform_0(%arg0: i32, %arg1: i32) -> (i32, i32, i32) {
    %c0_i32 = arith.constant 0 : i32
    %c0_i32_0 = arith.constant 0 : i32
    return %arg0, %arg1, %c0_i32 : i32, i32, i32
  }
  func.func @transform_1(%arg0: i32, %arg1: i32) -> (i32, i32) {
    %c0_i32 = arith.constant 0 : i32
    %c0_i32_0 = arith.constant 0 : i32
    %c0_i32_1 = arith.constant 0 : i32
    return %c0_i32, %c0_i32_0 : i32, i32
  }
  func.func @transform_2(%arg0: i32, %arg1: i32) -> (i32, i32) {
    %c0_i32 = arith.constant 0 : i32
    %c0_i32_0 = arith.constant 0 : i32
    return %arg0, %c0_i32 : i32, i32
  }
}

</mosaic_0001>

<llo_original>
// kernel: tpu_custom_call.1
$region0: #{tpu_custom_call.1}
  #allocation0 [shape = 'u32[]', space=smem, size = 0x4, offset = 0x4, fixed_abs, tag = 'smem constant byte address 0x4 - core index']
  #allocation1 [shape = 'u32[144,128]{1,0:T(1,128)}', space=vmem, size = 0x12000, scoped, tag = 'internal scratch']
  %s0 = inlined_call_operand.hbm [shape: bf16[2,256,128], index: 0, kind: input, shape index: {}]
  %s1 = inlined_call_operand.hbm [shape: bf16[128,128], index: 1, kind: input, shape index: {}]
  %s2 = inlined_call_operand.hbm [shape: f32[2,128], index: 2, kind: output, shape index: {}]
  %s3 = sld [smem:[#allocation0]]
  $region30: #{tpu_custom_call.1} parent=0
    _
  %s5 = ssub.s32 1, %s3
  %s6 = scalar_select 0, %s5, %s3
  $region1: #{tpu_custom_call.1} parent=0
    #allocation2 [shape = 'u8[131072]{0}', space=vmem, size = 0x20000, scoped, tag = 'input window, operand 0, single buffered']
    #allocation3 [shape = 's32[1]{0}', space=sflag, size = 0x4, scoped, tag = 'scoped memory for tpu_custom_call.1']
    #allocation4 [shape = 's32[1]{0}', space=sflag, size = 0x4, scoped, tag = 'scoped memory for tpu_custom_call.1']
    #allocation5 [shape = 'u8[32768]{0}', space=vmem, size = 0x8000, scoped, tag = 'input window, operand 1, single buffered']
    #allocation6 [shape = 's32[1]{0}', space=sflag, size = 0x4, scoped, tag = 'scoped memory for tpu_custom_call.1']
    #allocation7 [shape = 'u8[1024]{0}', space=vmem, size = 0x400, scoped, tag = 'output window, operand 0, single buffered']
    %7 = vsyncpa [#allocation3], 0
    %8 = vsyncpa [#allocation6], 0
    %9 = vsyncpa [#allocation4], 0
    // Predicated region
    $region2: #{tpu_custom_call.1} parent=1 // pred_check
      _
    $region3: #{tpu_custom_call.1} parent=1 // pred_check_branch
      %11 = sbr.rel (0) target = $region5
    $region4: #{tpu_custom_call.1} parent=1 // pred_region
      %s13 = ssub.s32 4096, 4096
      %14 = vsyncadd [#allocation3], %s13
      %s15 = sshll.u32 [#allocation2], 4
      %s16 = int_to_ptr.vmem [resolvable:$true] %s15
      %21 = dma.hbm_to_vmem [thread:$0]  %s0, 4096, %s16, [#allocation3], 64, 64, 4
    $region5: #{tpu_custom_call.1} parent=1 // pred_fallthru
      _
    // Predicated region
    $region6: #{tpu_custom_call.1} parent=1 // pred_check
      _
    $region7: #{tpu_custom_call.1} parent=1 // pred_check_branch
      %23 = sbr.rel (0) target = $region9
    $region8: #{tpu_custom_call.1} parent=1 // pred_region
      %s25 = ssub.s32 1024, 1024
      %26 = vsyncadd [#allocation6], %s25
      %s27 = sshll.u32 [#allocation5], 4
      %s28 = int_to_ptr.vmem [resolvable:$true] %s27
      %33 = dma.hbm_to_vmem [thread:$0]  %s1, 1024, %s28, [#allocation6], 64, 64, 4
    $region9: #{tpu_custom_call.1} parent=1 // pred_fallthru
      _
    // Predicated region
    $region10: #{tpu_custom_call.1} parent=1 // pred_check
      _
    $region11: #{tpu_custom_call.1} parent=1 // pred_check_branch
      %35 = sbr.rel (0) target = $region13
    $region12: #{tpu_custom_call.1} parent=1 // pred_region
      %36 = dma.done [#allocation3], 4096
    $region13: #{tpu_custom_call.1} parent=1 // pred_fallthru
      _
    // Predicated region
    $region14: #{tpu_custom_call.1} parent=1 // pred_check
      _
    $region15: #{tpu_custom_call.1} parent=1 // pred_check_branch
      %38 = sbr.rel (0) target = $region17
    $region16: #{tpu_custom_call.1} parent=1 // pred_region
      %39 = dma.done [#allocation6], 1024
    $region17: #{tpu_custom_call.1} parent=1 // pred_fallthru
      _
    %p41 = scmp.eq.s32.totalorder 0, 0
    // Predicated region
    $region18: #{tpu_custom_call.1} parent=1 // pred_check
      %p42 = pneg %p41
    $region19: #{tpu_custom_call.1} parent=1 // pred_check_branch
      %44 = sbr.rel (%p42) target = $region21
    $region20: #{tpu_custom_call.1} parent=1 // pred_region
      %45 = vst [vmem:[#allocation7] sm:$0x3] 0.0
    $region21: #{tpu_custom_call.1} parent=1 // pred_fallthru
      _
    %v46 = vld [vmem:[#allocation2] sm:$0xf]
    %v47 = vld [vmem:[#allocation2 + $0x4] sm:$0xf]
    %v48 = vld [vmem:[#allocation2 + $0x8] sm:$0xf]
    %v49 = vld [vmem:[#allocation2 + $0xc] sm:$0xf]
    %v50 = vld [vmem:[#allocation2 + $0x10] sm:$0xf]
    %v51 = vld [vmem:[#allocation2 + $0x14] sm:$0xf]
    %v52 = vld [vmem:[#allocation2 + $0x18] sm:$0xf]
    %v53 = vld [vmem:[#allocation2 + $0x1c] sm:$0xf]
    %v54 = vld [vmem:[#allocation2 + $0x20] sm:$0xf]
    %v55 = vld [vmem:[#allocation2 + $0x24] sm:$0xf]
    %v56 = vld [vmem:[#allocation2 + $0x28] sm:$0xf]
    %v57 = vld [vmem:[#allocation2 + $0x2c] sm:$0xf]
    %v58 = vld [vmem:[#allocation2 + $0x30] sm:$0xf]
    %v59 = vld [vmem:[#allocation2 + $0x34] sm:$0xf]
    %v60 = vld [vmem:[#allocation2 + $0x38] sm:$0xf]
    %v61 = vld [vmem:[#allocation2 + $0x3c] sm:$0xf]
    %v62 = vld [vmem:[#allocation2 + $0x40] sm:$0xf]
    %v63 = vld [vmem:[#allocation2 + $0x44] sm:$0xf]
    %v64 = vld [vmem:[#allocation2 + $0x48] sm:$0xf]
    %v65 = vld [vmem:[#allocation2 + $0x4c] sm:$0xf]
    %v66 = vld [vmem:[#allocation2 + $0x50] sm:$0xf]
    %v67 = vld [vmem:[#allocation2 + $0x54] sm:$0xf]
    %v68 = vld [vmem:[#allocation2 + $0x58] sm:$0xf]
    %v69 = vld [vmem:[#allocation2 + $0x5c] sm:$0xf]
    %v70 = vld [vmem:[#allocation2 + $0x60] sm:$0xf]
    %v71 = vld [vmem:[#allocation2 + $0x64] sm:$0xf]
    %v72 = vld [vmem:[#allocation2 + $0x68] sm:$0xf]
    %v73 = vld [vmem:[#allocation2 + $0x6c] sm:$0xf]
    %v74 = vld [vmem:[#allocation2 + $0x70] sm:$0xf]
    %v75 = vld [vmem:[#allocation2 + $0x74] sm:$0xf]
    %v76 = vld [vmem:[#allocation2 + $0x78] sm:$0xf]
    %v77 = vld [vmem:[#allocation2 + $0x7c] sm:$0xf]
    %v78 = vld [vmem:[#allocation2 + $0x80] sm:$0xf]
    %v79 = vld [vmem:[#allocation2 + $0x84] sm:$0xf]
    %v80 = vld [vmem:[#allocation2 + $0x88] sm:$0xf]
    %v81 = vld [vmem:[#allocation2 + $0x8c] sm:$0xf]
    %v82 = vld [vmem:[#allocation2 + $0x90] sm:$0xf]
    %v83 = vld [vmem:[#allocation2 + $0x94] sm:$0xf]
    %v84 = vld [vmem:[#allocation2 + $0x98] sm:$0xf]
    %v85 = vld [vmem:[#allocation2 + $0x9c] sm:$0xf]
    %v86 = vld [vmem:[#allocation2 + $0xa0] sm:$0xf]
    %v87 = vld [vmem:[#allocation2 + $0xa4] sm:$0xf]
    %v88 = vld [vmem:[#allocation2 + $0xa8] sm:$0xf]
    %v89 = vld [vmem:[#allocation2 + $0xac] sm:$0xf]
    %v90 = vld [vmem:[#allocation2 + $0xb0] sm:$0xf]
    %v91 = vld [vmem:[#allocation2 + $0xb4] sm:$0xf]
    %v92 = vld [vmem:[#allocation2 + $0xb8] sm:$0xf]
    %v93 = vld [vmem:[#allocation2 + $0xbc] sm:$0xf]
    %v94 = vld [vmem:[#allocation2 + $0xc0] sm:$0xf]
    %v95 = vld [vmem:[#allocation2 + $0xc4] sm:$0xf]
    %v96 = vld [vmem:[#allocation2 + $0xc8] sm:$0xf]
    %v97 = vld [vmem:[#allocation2 + $0xcc] sm:$0xf]
    %v98 = vld [vmem:[#allocation2 + $0xd0] sm:$0xf]
    %v99 = vld [vmem:[#allocation2 + $0xd4] sm:$0xf]
    %v100 = vld [vmem:[#allocation2 + $0xd8] sm:$0xf]
    %v101 = vld [vmem:[#allocation2 + $0xdc] sm:$0xf]
    %v102 = vld [vmem:[#allocation2 + $0xe0] sm:$0xf]
    %v103 = vld [vmem:[#allocation2 + $0xe4] sm:$0xf]
    %v104 = vld [vmem:[#allocation2 + $0xe8] sm:$0xf]
    %v105 = vld [vmem:[#allocation2 + $0xec] sm:$0xf]
    %v106 = vld [vmem:[#allocation2 + $0xf0] sm:$0xf]
    %v107 = vld [vmem:[#allocation2 + $0xf4] sm:$0xf]
    %v108 = vld [vmem:[#allocation2 + $0xf8] sm:$0xf]
    %v109 = vld [vmem:[#allocation2 + $0xfc] sm:$0xf]
    %v110 = vld [vmem:[#allocation5] sm:$0xf]
    %v111 = vld [vmem:[#allocation5 + $0x4] sm:$0xf]
    %v112 = vld [vmem:[#allocation5 + $0x8] sm:$0xf]
    %v113 = vld [vmem:[#allocation5 + $0xc] sm:$0xf]
    %v114 = vld [vmem:[#allocation5 + $0x10] sm:$0xf]
    %v115 = vld [vmem:[#allocation5 + $0x14] sm:$0xf]
    %v116 = vld [vmem:[#allocation5 + $0x18] sm:$0xf]
    %v117 = vld [vmem:[#allocation5 + $0x1c] sm:$0xf]
    %v118 = vld [vmem:[#allocation5 + $0x20] sm:$0xf]
    %v119 = vld [vmem:[#allocation5 + $0x24] sm:$0xf]
    %v120 = vld [vmem:[#allocation5 + $0x28] sm:$0xf]
    %v121 = vld [vmem:[#allocation5 + $0x2c] sm:$0xf]
    %v122 = vld [vmem:[#allocation5 + $0x30] sm:$0xf]
    %v123 = vld [vmem:[#allocation5 + $0x34] sm:$0xf]
    %v124 = vld [vmem:[#allocation5 + $0x38] sm:$0xf]
    %v125 = vld [vmem:[#allocation5 + $0x3c] sm:$0xf]
    %v190 = vunpack.c.l.b16 %v46
    %v191 = vunpack.c.l.b16 %v47
    %v192 = vunpack.c.l.b16 %v48
    %v193 = vunpack.c.l.b16 %v49
    %v194 = vunpack.c.l.b16 %v50
    %v195 = vunpack.c.l.b16 %v51
    %v196 = vunpack.c.l.b16 %v52
    %v197 = vunpack.c.l.b16 %v53
    %v198 = vunpack.c.l.b16 %v54
    %v199 = vunpack.c.l.b16 %v55
    %v200 = vunpack.c.l.b16 %v56
    %v201 = vunpack.c.l.b16 %v57
    %v202 = vunpack.c.l.b16 %v58
    %v203 = vunpack.c.l.b16 %v59
    %v204 = vunpack.c.l.b16 %v60
    %v205 = vunpack.c.l.b16 %v61
    %v206 = vunpack.c.l.b16 %v62
    %v207 = vunpack.c.l.b16 %v63
    %v208 = vunpack.c.l.b16 %v64
    %v209 = vunpack.c.l.b16 %v65
    %v210 = vunpack.c.l.b16 %v66
    %v211 = vunpack.c.l.b16 %v67
    %v212 = vunpack.c.l.b16 %v68
    %v213 = vunpack.c.l.b16 %v69
    %v214 = vunpack.c.l.b16 %v70
    %v215 = vunpack.c.l.b16 %v71
    %v216 = vunpack.c.l.b16 %v72
    %v217 = vunpack.c.l.b16 %v73
    %v218 = vunpack.c.l.b16 %v74
    %v219 = vunpack.c.l.b16 %v75
    %v220 = vunpack.c.l.b16 %v76
    %v221 = vunpack.c.l.b16 %v77
    %v222 = vunpack.c.l.b16 %v78
    %v223 = vunpack.c.l.b16 %v79
    %v224 = vunpack.c.l.b16 %v80
    %v225 = vunpack.c.l.b16 %v81
    %v226 = vunpack.c.l.b16 %v82
    %v227 = vunpack.c.l.b16 %v83
    %v228 = vunpack.c.l.b16 %v84
    %v229 = vunpack.c.l.b16 %v85
    %v230 = vunpack.c.l.b16 %v86
    %v231 = vunpack.c.l.b16 %v87
    %v232 = vunpack.c.l.b16 %v88
    %v233 = vunpack.c.l.b16 %v89
    %v234 = vunpack.c.l.b16 %v90
    %v235 = vunpack.c.l.b16 %v91
    %v236 = vunpack.c.l.b16 %v92
    %v237 = vunpack.c.l.b16 %v93
    %v238 = vunpack.c.l.b16 %v94
    %v239 = vunpack.c.l.b16 %v95
    %v240 = vunpack.c.l.b16 %v96
    %v241 = vunpack.c.l.b16 %v97
    %v242 = vunpack.c.l.b16 %v98
    %v243 = vunpack.c.l.b16 %v99
    %v244 = vunpack.c.l.b16 %v100
    %v245 = vunpack.c.l.b16 %v101
    %v246 = vunpack.c.l.b16 %v102
    %v247 = vunpack.c.l.b16 %v103
    %v248 = vunpack.c.l.b16 %v104
    %v249 = vunpack.c.l.b16 %v105
    %v250 = vunpack.c.l.b16 %v106
    %v251 = vunpack.c.l.b16 %v107
    %v252 = vunpack.c.l.b16 %v108
    %v253 = vunpack.c.l.b16 %v109
    %v254 = vpack.c.b16 %v191, %v190
    %v255 = vpack.c.b16 %v193, %v192
    %v256 = vpack.c.b16 %v195, %v194
    %v257 = vpack.c.b16 %v197, %v196
    %v258 = vpack.c.b16 %v199, %v198
    %v259 = vpack.c.b16 %v201, %v200
    %v260 = vpack.c.b16 %v203, %v202
    %v261 = vpack.c.b16 %v205, %v204
    %v262 = vpack.c.b16 %v207, %v206
    %v263 = vpack.c.b16 %v209, %v208
    %v264 = vpack.c.b16 %v211, %v210
    %v265 = vpack.c.b16 %v213, %v212
    %v266 = vpack.c.b16 %v215, %v214
    %v267 = vpack.c.b16 %v217, %v216
    %v268 = vpack.c.b16 %v219, %v218
    %v269 = vpack.c.b16 %v221, %v220
    %v270 = vpack.c.b16 %v223, %v222
    %v271 = vpack.c.b16 %v225, %v224
    %v272 = vpack.c.b16 %v227, %v226
    %v273 = vpack.c.b16 %v229, %v228
    %v274 = vpack.c.b16 %v231, %v230
    %v275 = vpack.c.b16 %v233, %v232
    %v276 = vpack.c.b16 %v235, %v234
    %v277 = vpack.c.b16 %v237, %v236
    %v278 = vpack.c.b16 %v239, %v238
    %v279 = vpack.c.b16 %v241, %v240
    %v280 = vpack.c.b16 %v243, %v242
    %v281 = vpack.c.b16 %v245, %v244
    %v282 = vpack.c.b16 %v247, %v246
    %v283 = vpack.c.b16 %v249, %v248
    %v284 = vpack.c.b16 %v251, %v250
    %v285 = vpack.c.b16 %v253, %v252
    %v334 = vunpack.c.l.b16 %v110
    %v335 = vunpack.c.l.b16 %v111
    %v336 = vunpack.c.l.b16 %v112
    %v337 = vunpack.c.l.b16 %v113
    %v338 = vunpack.c.l.b16 %v114
    %v339 = vunpack.c.l.b16 %v115
    %v340 = vunpack.c.l.b16 %v116
    %v341 = vunpack.c.l.b16 %v117
    %v342 = vunpack.c.l.b16 %v118
    %v343 = vunpack.c.l.b16 %v119
    %v344 = vunpack.c.l.b16 %v120
    %v345 = vunpack.c.l.b16 %v121
    %v346 = vunpack.c.l.b16 %v122
    %v347 = vunpack.c.l.b16 %v123
    %v348 = vunpack.c.l.b16 %v124
    %v349 = vunpack.c.l.b16 %v125
    %v350 = vpack.c.b16 %v335, %v334
    %v351 = vpack.c.b16 %v337, %v336
    %v352 = vpack.c.b16 %v339, %v338
    %v353 = vpack.c.b16 %v341, %v340
    %v354 = vpack.c.b16 %v343, %v342
    %v355 = vpack.c.b16 %v345, %v344
    %v356 = vpack.c.b16 %v347, %v346
    %v357 = vpack.c.b16 %v349, %v348
    %366 = vmatprep.subr.bf16.mxu0 0
    %367 = vmatpush1.bf16.msra.mxu0 %v350
    %368 = vmatprep.subr.bf16.mxu0 0
    %369 = vmatpush1.bf16.msra.mxu0 %v351
    %370 = vmatprep.subr.bf16.mxu0 0
    %371 = vmatpush1.bf16.msra.mxu0 %v352
    %372 = vmatprep.subr.bf16.mxu0 0
    %373 = vmatpush1.bf16.msra.mxu0 %v353
    %374 = vmatprep.subr.bf16.mxu0 0
    %375 = vmatpush1.bf16.msra.mxu0 %v354
    %376 = vmatprep.subr.bf16.mxu0 0
    %377 = vmatpush1.bf16.msra.mxu0 %v355
    %378 = vmatprep.subr.bf16.mxu0 0
    %379 = vmatpush1.bf16.msra.mxu0 %v356
    %380 = vmatprep.subr.bf16.mxu0 0
    %381 = vmatpush1.bf16.msra.mxu0 %v357
    %382 = vmatprep.subr.bf16.mxu0 0
    %383 = vmatpush1.bf16.msra.mxu0 0
    %384 = vmatprep.subr.bf16.mxu0 0
    %385 = vmatpush1.bf16.msra.mxu0 0
    %386 = vmatprep.subr.bf16.mxu0 0
    %387 = vmatpush1.bf16.msra.mxu0 0
    %388 = vmatprep.subr.bf16.mxu0 0
    %389 = vmatpush1.bf16.msra.mxu0 0
    %390 = vmatprep.subr.bf16.mxu0 0
    %391 = vmatpush1.bf16.msra.mxu0 0
    %392 = vmatprep.subr.bf16.mxu0 0
    %393 = vmatpush1.bf16.msra.mxu0 0
    %394 = vmatprep.subr.bf16.mxu0 0
    %395 = vmatpush1.bf16.msra.mxu0 0
    %396 = vmatprep.subr.bf16.mxu0 0
    %397 = vmatpush1.bf16.msra.mxu0 0
    %398 = vmatprep.mubr.bf16.mxu0 0
    %399 = vmatmul.mubr.bf16.gmra.mrb[0].mxu0 %v254
    %v400 = vpop.f32.mrb[0].mxu0
    %v401 = vadd.f32 0.0, %v400
    %v402 = vpop.f32.mrb[0].mxu0
    %v403 = vpop.f32.mrb[0].mxu0
    %v404 = vadd.f32 0.0, %v403
    %v405 = vpop.f32.mrb[0].mxu0
    %406 = vmatprep.mubr.bf16.mxu0 0
    %407 = vmatmul.mubr.bf16.gmra.mrb[0].mxu0 %v255
    %v408 = vpop.f32.mrb[0].mxu0
    %v409 = vadd.f32 0.0, %v408
    %v410 = vpop.f32.mrb[0].mxu0
    %v411 = vpop.f32.mrb[0].mxu0
    %v412 = vadd.f32 0.0, %v411
    %v413 = vpop.f32.mrb[0].mxu0
    %414 = vmatprep.mubr.bf16.mxu0 0
    %415 = vmatmul.mubr.bf16.gmra.mrb[0].mxu0 %v256
    %v416 = vpop.f32.mrb[0].mxu0
    %v417 = vadd.f32 0.0, %v416
    %v418 = vpop.f32.mrb[0].mxu0
    %v419 = vpop.f32.mrb[0].mxu0
    %v420 = vadd.f32 0.0, %v419
    %v421 = vpop.f32.mrb[0].mxu0
    %422 = vmatprep.mubr.bf16.mxu0 0
    %423 = vmatmul.mubr.bf16.gmra.mrb[0].mxu0 %v257
    %v424 = vpop.f32.mrb[0].mxu0
    %v425 = vadd.f32 0.0, %v424
    %v426 = vpop.f32.mrb[0].mxu0
    %v427 = vpop.f32.mrb[0].mxu0
    %v428 = vadd.f32 0.0, %v427
    %v429 = vpop.f32.mrb[0].mxu0
    %430 = vmatprep.mubr.bf16.mxu0 0
    %431 = vmatmul.mubr.bf16.gmra.mrb[0].mxu0 %v258
    %v432 = vpop.f32.mrb[0].mxu0
    %v433 = vadd.f32 0.0, %v432
    %v434 = vpop.f32.mrb[0].mxu0
    %v435 = vpop.f32.mrb[0].mxu0
    %v436 = vadd.f32 0.0, %v435
    %v437 = vpop.f32.mrb[0].mxu0
    %438 = vmatprep.mubr.bf16.mxu0 0
    %439 = vmatmul.mubr.bf16.gmra.mrb[0].mxu0 %v259
    %v440 = vpop.f32.mrb[0].mxu0
    %v441 = vadd.f32 0.0, %v440
    %v442 = vpop.f32.mrb[0].mxu0
    %v443 = vpop.f32.mrb[0].mxu0
    %v444 = vadd.f32 0.0, %v443
    %v445 = vpop.f32.mrb[0].mxu0
    %446 = vmatprep.mubr.bf16.mxu0 0
    %447 = vmatmul.mubr.bf16.gmra.mrb[0].mxu0 %v260
    %v448 = vpop.f32.mrb[0].mxu0
    %v449 = vadd.f32 0.0, %v448
    %v450 = vpop.f32.mrb[0].mxu0
    %v451 = vpop.f32.mrb[0].mxu0
    %v452 = vadd.f32 0.0, %v451
    %v453 = vpop.f32.mrb[0].mxu0
    %454 = vmatprep.mubr.bf16.mxu0 0
    %455 = vmatmul.mubr.bf16.gmra.mrb[0].mxu0 %v261
    %v456 = vpop.f32.mrb[0].mxu0
    %v457 = vadd.f32 0.0, %v456
    %v458 = vpop.f32.mrb[0].mxu0
    %v459 = vpop.f32.mrb[0].mxu0
    %v460 = vadd.f32 0.0, %v459
    %v461 = vpop.f32.mrb[0].mxu0
    %462 = vmatprep.mubr.bf16.mxu0 0
    %463 = vmatmul.mubr.bf16.gmra.mrb[0].mxu0 %v262
    %v464 = vpop.f32.mrb[0].mxu0
    %v465 = vadd.f32 0.0, %v464
    %v466 = vpop.f32.mrb[0].mxu0
    %v467 = vpop.f32.mrb[0].mxu0
    %v468 = vadd.f32 0.0, %v467
    %v469 = vpop.f32.mrb[0].mxu0
    %470 = vmatprep.mubr.bf16.mxu0 0
    %471 = vmatmul.mubr.bf16.gmra.mrb[0].mxu0 %v263
    %v472 = vpop.f32.mrb[0].mxu0
    %v473 = vadd.f32 0.0, %v472
    %v474 = vpop.f32.mrb[0].mxu0
    %v475 = vpop.f32.mrb[0].mxu0
    %v476 = vadd.f32 0.0, %v475
    %v477 = vpop.f32.mrb[0].mxu0
    %478 = vmatprep.mubr.bf16.mxu0 0
    %479 = vmatmul.mubr.bf16.gmra.mrb[0].mxu0 %v264
    %v480 = vpop.f32.mrb[0].mxu0
    %v481 = vadd.f32 0.0, %v480
    %v482 = vpop.f32.mrb[0].mxu0
    %v483 = vpop.f32.mrb[0].mxu0
    %v484 = vadd.f32 0.0, %v483
    %v485 = vpop.f32.mrb[0].mxu0
    %486 = vmatprep.mubr.bf16.mxu0 0
    %487 = vmatmul.mubr.bf16.gmra.mrb[0].mxu0 %v265
    %v488 = vpop.f32.mrb[0].mxu0
    %v489 = vadd.f32 0.0, %v488
    %v490 = vpop.f32.mrb[0].mxu0
    %v491 = vpop.f32.mrb[0].mxu0
    %v492 = vadd.f32 0.0, %v491
    %v493 = vpop.f32.mrb[0].mxu0
    %494 = vmatprep.mubr.bf16.mxu0 0
    %495 = vmatmul.mubr.bf16.gmra.mrb[0].mxu0 %v266
    %v496 = vpop.f32.mrb[0].mxu0
    %v497 = vadd.f32 0.0, %v496
    %v498 = vpop.f32.mrb[0].mxu0
    %v499 = vpop.f32.mrb[0].mxu0
    %v500 = vadd.f32 0.0, %v499
    %v501 = vpop.f32.mrb[0].mxu0
    %502 = vmatprep.mubr.bf16.mxu0 0
    %503 = vmatmul.mubr.bf16.gmra.mrb[0].mxu0 %v267
    %v504 = vpop.f32.mrb[0].mxu0
    %v505 = vadd.f32 0.0, %v504
    %v506 = vpop.f32.mrb[0].mxu0
    %v507 = vpop.f32.mrb[0].mxu0
    %v508 = vadd.f32 0.0, %v507
    %v509 = vpop.f32.mrb[0].mxu0
    %510 = vmatprep.mubr.bf16.mxu0 0
    %511 = vmatmul.mubr.bf16.gmra.mrb[0].mxu0 %v268
    %v512 = vpop.f32.mrb[0].mxu0
    %v513 = vadd.f32 0.0, %v512
    %v514 = vpop.f32.mrb[0].mxu0
    %v515 = vpop.f32.mrb[0].mxu0
    %v516 = vadd.f32 0.0, %v515
    %v517 = vpop.f32.mrb[0].mxu0
    %518 = vmatprep.mubr.bf16.mxu0 0
    %519 = vmatmul.mubr.bf16.gmra.mrb[0].mxu0 %v269
    %v520 = vpop.f32.mrb[0].mxu0
    %v521 = vadd.f32 0.0, %v520
    %v522 = vpop.f32.mrb[0].mxu0
    %v523 = vpop.f32.mrb[0].mxu0
    %v524 = vadd.f32 0.0, %v523
    %v525 = vpop.f32.mrb[0].mxu0
    %526 = vmatprep.mubr.bf16.mxu0 0
    %527 = vmatmul.mubr.bf16.gmra.mrb[0].mxu0 %v270
    %v528 = vpop.f32.mrb[0].mxu0
    %v529 = vadd.f32 0.0, %v528
    %v530 = vpop.f32.mrb[0].mxu0
    %v531 = vpop.f32.mrb[0].mxu0
    %v532 = vadd.f32 0.0, %v531
    %v533 = vpop.f32.mrb[0].mxu0
    %534 = vmatprep.mubr.bf16.mxu0 0
    %535 = vmatmul.mubr.bf16.gmra.mrb[0].mxu0 %v271
    %v536 = vpop.f32.mrb[0].mxu0
    %v537 = vadd.f32 0.0, %v536
    %v538 = vpop.f32.mrb[0].mxu0
    %v539 = vpop.f32.mrb[0].mxu0
    %v540 = vadd.f32 0.0, %v539
    %v541 = vpop.f32.mrb[0].mxu0
    %542 = vmatprep.mubr.bf16.mxu0 0
    %543 = vmatmul.mubr.bf16.gmra.mrb[0].mxu0 %v272
    %v544 = vpop.f32.mrb[0].mxu0
    %v545 = vadd.f32 0.0, %v544
    %v546 = vpop.f32.mrb[0].mxu0
    %v547 = vpop.f32.mrb[0].mxu0
    %v548 = vadd.f32 0.0, %v547
    %v549 = vpop.f32.mrb[0].mxu0
    %550 = vmatprep.mubr.bf16.mxu0 0
    %551 = vmatmul.mubr.bf16.gmra.mrb[0].mxu0 %v273
    %v552 = vpop.f32.mrb[0].mxu0
    %v553 = vadd.f32 0.0, %v552
    %v554 = vpop.f32.mrb[0].mxu0
    %v555 = vpop.f32.mrb[0].mxu0
    %v556 = vadd.f32 0.0, %v555
    %v557 = vpop.f32.mrb[0].mxu0
    %558 = vmatprep.mubr.bf16.mxu0 0
    %559 = vmatmul.mubr.bf16.gmra.mrb[0].mxu0 %v274
    %v560 = vpop.f32.mrb[0].mxu0
    %v561 = vadd.f32 0.0, %v560
    %v562 = vpop.f32.mrb[0].mxu0
    %v563 = vpop.f32.mrb[0].mxu0
    %v564 = vadd.f32 0.0, %v563
    %v565 = vpop.f32.mrb[0].mxu0
    %566 = vmatprep.mubr.bf16.mxu0 0
    %567 = vmatmul.mubr.bf16.gmra.mrb[0].mxu0 %v275
    %v568 = vpop.f32.mrb[0].mxu0
    %v569 = vadd.f32 0.0, %v568
    %v570 = vpop.f32.mrb[0].mxu0
    %v571 = vpop.f32.mrb[0].mxu0
    %v572 = vadd.f32 0.0, %v571
    %v573 = vpop.f32.mrb[0].mxu0
    %574 = vmatprep.mubr.bf16.mxu0 0
    %575 = vmatmul.mubr.bf16.gmra.mrb[0].mxu0 %v276
    %v576 = vpop.f32.mrb[0].mxu0
    %v577 = vadd.f32 0.0, %v576
    %v578 = vpop.f32.mrb[0].mxu0
    %v579 = vpop.f32.mrb[0].mxu0
    %v580 = vadd.f32 0.0, %v579
    %v581 = vpop.f32.mrb[0].mxu0
    %582 = vmatprep.mubr.bf16.mxu0 0
    %583 = vmatmul.mubr.bf16.gmra.mrb[0].mxu0 %v277
    %v584 = vpop.f32.mrb[0].mxu0
    %v585 = vadd.f32 0.0, %v584
    %v586 = vpop.f32.mrb[0].mxu0
    %v587 = vpop.f32.mrb[0].mxu0
    %v588 = vadd.f32 0.0, %v587
    %v589 = vpop.f32.mrb[0].mxu0
    %590 = vmatprep.mubr.bf16.mxu0 0
    %591 = vmatmul.mubr.bf16.gmra.mrb[0].mxu0 %v278
    %v592 = vpop.f32.mrb[0].mxu0
    %v593 = vadd.f32 0.0, %v592
    %v594 = vpop.f32.mrb[0].mxu0
    %v595 = vpop.f32.mrb[0].mxu0
    %v596 = vadd.f32 0.0, %v595
    %v597 = vpop.f32.mrb[0].mxu0
    %598 = vmatprep.mubr.bf16.mxu0 0
    %599 = vmatmul.mubr.bf16.gmra.mrb[0].mxu0 %v279
    %v600 = vpop.f32.mrb[0].mxu0
    %v601 = vadd.f32 0.0, %v600
    %v602 = vpop.f32.mrb[0].mxu0
    %v603 = vpop.f32.mrb[0].mxu0
    %v604 = vadd.f32 0.0, %v603
    %v605 = vpop.f32.mrb[0].mxu0
    %606 = vmatprep.mubr.bf16.mxu0 0
    %607 = vmatmul.mubr.bf16.gmra.mrb[0].mxu0 %v280
    %v608 = vpop.f32.mrb[0].mxu0
    %v609 = vadd.f32 0.0, %v608
    %v610 = vpop.f32.mrb[0].mxu0
    %v611 = vpop.f32.mrb[0].mxu0
    %v612 = vadd.f32 0.0, %v611
    %v613 = vpop.f32.mrb[0].mxu0
    %614 = vmatprep.mubr.bf16.mxu0 0
    %615 = vmatmul.mubr.bf16.gmra.mrb[0].mxu0 %v281
    %v616 = vpop.f32.mrb[0].mxu0
    %v617 = vadd.f32 0.0, %v616
    %v618 = vpop.f32.mrb[0].mxu0
    %v619 = vpop.f32.mrb[0].mxu0
    %v620 = vadd.f32 0.0, %v619
    %v621 = vpop.f32.mrb[0].mxu0
    %622 = vmatprep.mubr.bf16.mxu0 0
    %623 = vmatmul.mubr.bf16.gmra.mrb[0].mxu0 %v282
    %v624 = vpop.f32.mrb[0].mxu0
    %v625 = vadd.f32 0.0, %v624
    %v626 = vpop.f32.mrb[0].mxu0
    %v627 = vpop.f32.mrb[0].mxu0
    %v628 = vadd.f32 0.0, %v627
    %v629 = vpop.f32.mrb[0].mxu0
    %630 = vmatprep.mubr.bf16.mxu0 0
    %631 = vmatmul.mubr.bf16.gmra.mrb[0].mxu0 %v283
    %v632 = vpop.f32.mrb[0].mxu0
    %v633 = vadd.f32 0.0, %v632
    %v634 = vpop.f32.mrb[0].mxu0
    %v635 = vpop.f32.mrb[0].mxu0
    %v636 = vadd.f32 0.0, %v635
    %v637 = vpop.f32.mrb[0].mxu0
    %638 = vmatprep.mubr.bf16.mxu0 0
    %639 = vmatmul.mubr.bf16.gmra.mrb[0].mxu0 %v284
    %v640 = vpop.f32.mrb[0].mxu0
    %v641 = vadd.f32 0.0, %v640
    %v642 = vpop.f32.mrb[0].mxu0
    %v643 = vpop.f32.mrb[0].mxu0
    %v644 = vadd.f32 0.0, %v643
    %v645 = vpop.f32.mrb[0].mxu0
    %646 = vmatprep.mubr.bf16.mxu0 0
    %647 = vmatmul.mubr.bf16.gmra.mrb[0].mxu0 %v285
    %v648 = vpop.f32.mrb[0].mxu0
    %v649 = vadd.f32 0.0, %v648
    %v650 = vpop.f32.mrb[0].mxu0
    %v651 = vpop.f32.mrb[0].mxu0
    %v652 = vadd.f32 0.0, %v651
    %v653 = vpop.f32.mrb[0].mxu0
    %654 = vdwg.mxu0
    %v655 = vmax.f32 %v401, 0.0
    %v656 = vmax.f32 %v404, 0.0
    %v657 = vmax.f32 %v409, 0.0
    %v658 = vmax.f32 %v412, 0.0
    %v659 = vmax.f32 %v417, 0.0
    %v660 = vmax.f32 %v420, 0.0
    %v661 = vmax.f32 %v425, 0.0
    %v662 = vmax.f32 %v428, 0.0
    %v663 = vmax.f32 %v433, 0.0
    %v664 = vmax.f32 %v436, 0.0
    %v665 = vmax.f32 %v441, 0.0
    %v666 = vmax.f32 %v444, 0.0
    %v667 = vmax.f32 %v449, 0.0
    %v668 = vmax.f32 %v452, 0.0
    %v669 = vmax.f32 %v457, 0.0
    %v670 = vmax.f32 %v460, 0.0
    %v671 = vmax.f32 %v465, 0.0
    %v672 = vmax.f32 %v468, 0.0
    %v673 = vmax.f32 %v473, 0.0
    %v674 = vmax.f32 %v476, 0.0
    %v675 = vmax.f32 %v481, 0.0
    %v676 = vmax.f32 %v484, 0.0
    %v677 = vmax.f32 %v489, 0.0
    %v678 = vmax.f32 %v492, 0.0
    %v679 = vmax.f32 %v497, 0.0
    %v680 = vmax.f32 %v500, 0.0
    %v681 = vmax.f32 %v505, 0.0
    %v682 = vmax.f32 %v508, 0.0
    %v683 = vmax.f32 %v513, 0.0
    %v684 = vmax.f32 %v516, 0.0
    %v685 = vmax.f32 %v521, 0.0
    %v686 = vmax.f32 %v524, 0.0
    %v687 = vmax.f32 %v529, 0.0
    %v688 = vmax.f32 %v532, 0.0
    %v689 = vmax.f32 %v537, 0.0
    %v690 = vmax.f32 %v540, 0.0
    %v691 = vmax.f32 %v545, 0.0
    %v692 = vmax.f32 %v548, 0.0
    %v693 = vmax.f32 %v553, 0.0
    %v694 = vmax.f32 %v556, 0.0
    %v695 = vmax.f32 %v561, 0.0
    %v696 = vmax.f32 %v564, 0.0
    %v697 = vmax.f32 %v569, 0.0
    %v698 = vmax.f32 %v572, 0.0
    %v699 = vmax.f32 %v577, 0.0
    %v700 = vmax.f32 %v580, 0.0
    %v701 = vmax.f32 %v585, 0.0
    %v702 = vmax.f32 %v588, 0.0
    %v703 = vmax.f32 %v593, 0.0
    %v704 = vmax.f32 %v596, 0.0
    %v705 = vmax.f32 %v601, 0.0
    %v706 = vmax.f32 %v604, 0.0
    %v707 = vmax.f32 %v609, 0.0
    %v708 = vmax.f32 %v612, 0.0
    %v709 = vmax.f32 %v617, 0.0
    %v710 = vmax.f32 %v620, 0.0
    %v711 = vmax.f32 %v625, 0.0
    %v712 = vmax.f32 %v628, 0.0
    %v713 = vmax.f32 %v633, 0.0
    %v714 = vmax.f32 %v636, 0.0
    %v715 = vmax.f32 %v641, 0.0
    %v716 = vmax.f32 %v644, 0.0
    %v717 = vmax.f32 %v649, 0.0
    %v718 = vmax.f32 %v652, 0.0
    %v719 = vld [vmem:[#allocation7] sm:$0x3]
    %v720 = vadd.f32 %v655, %v656
    %v721 = vadd.f32 %v720, %v657
    %v722 = vadd.f32 %v721, %v658
    %v723 = vadd.f32 %v722, %v659
    %v724 = vadd.f32 %v723, %v660
    %v725 = vadd.f32 %v724, %v661
    %v726 = vadd.f32 %v725, %v662
    %v727 = vadd.f32 %v726, %v663
    %v728 = vadd.f32 %v727, %v664
    %v729 = vadd.f32 %v728, %v665
    %v730 = vadd.f32 %v729, %v666
    %v731 = vadd.f32 %v730, %v667
    %v732 = vadd.f32 %v731, %v668
    %v733 = vadd.f32 %v732, %v669
    %v734 = vadd.f32 %v733, %v670
    %v735 = vadd.f32 %v734, %v671
    %v736 = vadd.f32 %v735, %v672
    %v737 = vadd.f32 %v736, %v673
    %v738 = vadd.f32 %v737, %v674
    %v739 = vadd.f32 %v738, %v675
    %v740 = vadd.f32 %v739, %v676
    %v741 = vadd.f32 %v740, %v677
    %v742 = vadd.f32 %v741, %v678
    %v743 = vadd.f32 %v742, %v679
    %v744 = vadd.f32 %v743, %v680
    %v745 = vadd.f32 %v744, %v681
    %v746 = vadd.f32 %v745, %v682
    %v747 = vadd.f32 %v746, %v683
    %v748 = vadd.f32 %v747, %v684
    %v749 = vadd.f32 %v748, %v685
    %v750 = vadd.f32 %v749, %v686
    %v751 = vrot.slane %v750, 4
    %v752 = vadd.f32 %v750, %v751
    %v753 = vrot.slane %v752, 2
    %v754 = vadd.f32 %v752, %v753
    %v755 = vrot.slane %v754, 1
    %v756 = vadd.f32 %v754, %v755
    %v757 = vadd.f32 %v687, %v688
    %v758 = vadd.f32 %v757, %v689
    %v759 = vadd.f32 %v758, %v690
    %v760 = vadd.f32 %v759, %v691
    %v761 = vadd.f32 %v760, %v692
    %v762 = vadd.f32 %v761, %v693
    %v763 = vadd.f32 %v762, %v694
    %v764 = vadd.f32 %v763, %v695
    %v765 = vadd.f32 %v764, %v696
    %v766 = vadd.f32 %v765, %v697
    %v767 = vadd.f32 %v766, %v698
    %v768 = vadd.f32 %v767, %v699
    %v769 = vadd.f32 %v768, %v700
    %v770 = vadd.f32 %v769, %v701
    %v771 = vadd.f32 %v770, %v702
    %v772 = vadd.f32 %v771, %v703
    %v773 = vadd.f32 %v772, %v704
    %v774 = vadd.f32 %v773, %v705
    %v775 = vadd.f32 %v774, %v706
    %v776 = vadd.f32 %v775, %v707
    %v777 = vadd.f32 %v776, %v708
    %v778 = vadd.f32 %v777, %v709
    %v779 = vadd.f32 %v778, %v710
    %v780 = vadd.f32 %v779, %v711
    %v781 = vadd.f32 %v780, %v712
    %v782 = vadd.f32 %v781, %v713
    %v783 = vadd.f32 %v782, %v714
    %v784 = vadd.f32 %v783, %v715
    %v785 = vadd.f32 %v784, %v716
    %v786 = vadd.f32 %v785, %v717
    %v787 = vadd.f32 %v786, %v718
    %v788 = vrot.slane %v787, 4
    %v789 = vadd.f32 %v787, %v788
    %v790 = vrot.slane %v789, 2
    %v791 = vadd.f32 %v789, %v790
    %v792 = vrot.slane %v791, 1
    %v793 = vadd.f32 %v791, %v792
    %v794 = vmul.f32 %v756, 0.00390625
    %v795 = vmul.f32 %v793, 0.00390625
    %vm798 = vcmask 1041409
    %v799 = vsel %vm798, %v795, %v794
    %v801 = vadd.f32 %v719, %v799
    %802 = vst [vmem:[#allocation7] sm:$0x3] %v801
    // Predicated region
    $region22: #{tpu_custom_call.1} parent=1 // pred_check
      _
    $region23: #{tpu_custom_call.1} parent=1 // pred_check_branch
      %804 = sbr.rel (0) target = $region25
    $region24: #{tpu_custom_call.1} parent=1 // pred_region
      %s806 = ssub.s32 32, 32
      %807 = vsyncadd [#allocation4], %s806
      %s809 = sshll.u32 [#allocation7], 4
      %s810 = int_to_ptr.vmem [resolvable:$true] %s809
      %812 = dma.vmem_to_hbm [thread:$0]  %s810, 32, %s2, [#allocation4]
    $region25: #{tpu_custom_call.1} parent=1 // pred_fallthru
      _
    // Predicated region
    $region26: #{tpu_custom_call.1} parent=1 // pred_check
      _
    $region27: #{tpu_custom_call.1} parent=1 // pred_check_branch
      %814 = sbr.rel (0) target = $region29
    $region28: #{tpu_custom_call.1} parent=1 // pred_region
      %815 = dma.done [#allocation4], 32
    $region29: #{tpu_custom_call.1} parent=1 // pred_fallthru
      _
    %816 = vsyncpa [#allocation3], 1
    %817 = vsyncpa [#allocation6], 1
    %818 = vsyncpa [#allocation4], 1

</llo_original>
